<compile_context>
chip_gen: v7x
topology: tpu7x:2x2x1
jax: 0.10.0
libtpu: 0.0.40
codegen_flags: <defaults>
</compile_context>

<pallas_src>
import math
from functools import partial

import jax
import jax.numpy as jnp
from jax.experimental import pallas as pl
from jax.experimental.pallas import tpu as pltpu


D_IN, D_H1, D_H2, D_H3, D_OUT = 10, 200, 30, 10, 1


def _round_up(x, m):
    return ((x + m - 1) // m) * m


def _mlp_kernel(x_ref,
                w1_ref, b1_ref,
                w2_ref, b2_ref,
                w3_ref, b3_ref,
                w4_ref, b4_ref,
                o_ref, *, matmul_dtype):
    """One batch tile.  x_ref is (10, TB): features on sublanes, batch on lanes."""

    def linear(w_ref, b_ref, h):
        # bf16 (or f32) MXU operands, f32 accumulation, f32 bias add.
        return jnp.dot(w_ref[...].astype(matmul_dtype),
                       h.astype(matmul_dtype),
                       preferred_element_type=jnp.float32) + b_ref[...]

    h = x_ref[...]                                   # (10,  TB) f32
    h = jax.nn.sigmoid(linear(w1_ref, b1_ref, h))    # (200, TB) f32 sigmoid (EUP)
    h = jax.nn.sigmoid(linear(w2_ref, b2_ref, h))    # (30,  TB)
    h = jax.nn.sigmoid(linear(w3_ref, b3_ref, h))    # (10,  TB)
    # Final layer, lane-dense (1, TB) store.
    o_ref[...] = linear(w4_ref, b4_ref, h).astype(o_ref.dtype)


def mlp_forward(x, params, *, batch_tile=512, matmul_dtype=jnp.bfloat16):
    """x: (B, 10) float32 -> (B, 1) float32."""
    (w1, b1), (w2, b2), (w3, b3), (w4, b4) = params
    B = x.shape[0]

    # Batch tile: multiple of 128 (lane-dense output + (8,128) rule), capped so
    # a tiny batch does not pad all the way up to `batch_tile`.
    tb = _round_up(min(batch_tile, _round_up(B, 128)), 128)
    b_pad = _round_up(B, tb)
    grid = (b_pad // tb,)

    # Feature-major input: (10, B_pad).  Padded columns compute harmless junk
    # that is sliced away below.
    xt = jnp.pad(x.astype(jnp.float32).T, ((0, 0), (0, b_pad - B)))

    def rep(a):  # tiny weight/bias arrays: whole array, resident every step
        return pl.BlockSpec(a.shape, lambda i: (0, 0))

    in_specs = [pl.BlockSpec((D_IN, tb), lambda i: (0, i)),
                rep(w1), rep(b1),
                rep(w2), rep(b2),
                rep(w3), rep(b3),
                rep(w4), rep(b4)]
    out_specs = pl.BlockSpec((D_OUT, tb), lambda i: (0, i))

    # VMEM budget derived from the actual tile footprint (f32 activations,
    # f32 params, double-buffered x/out tiles), with generous headroom.
    act_bytes = tb * (D_IN + D_H1 + D_H2 + D_H3 + D_OUT) * 4
    par_bytes = 4 * sum(int(w.size) + int(b.size) for (w, b) in params)
    io_bytes = 2 * (tb * D_IN * 4 + tb * D_OUT * 4)
    vmem_limit = max(4 * (act_bytes + par_bytes + io_bytes), 4 * 1024 * 1024)

    cost = pl.CostEstimate(
        flops=2 * b_pad * (D_IN * D_H1 + D_H1 * D_H2 + D_H2 * D_H3 + D_H3 * D_OUT),
        transcendentals=b_pad * (D_H1 + D_H2 + D_H3),
        bytes_accessed=b_pad * (D_IN + D_OUT) * 4 + par_bytes)

    out_t = pl.pallas_call(
        partial(_mlp_kernel, matmul_dtype=matmul_dtype),
        out_shape=jax.ShapeDtypeStruct((D_OUT, b_pad), jnp.float32),
        grid=grid,
        in_specs=in_specs,
        out_specs=out_specs,
        compiler_params=pltpu.CompilerParams(
            dimension_semantics=("parallel",),   # v7x: shard batch tiles over both TCs
            vmem_limit_bytes=int(vmem_limit)),
        cost_estimate=cost,
    )(xt, w1, b1, w2, b2, w3, b3, w4, b4)

    return out_t[:, :B].T                        # (B, 1)


def init_linear(key, fan_in, fan_out):
    """PyTorch nn.Linear default init: U(-1/sqrt(fan_in), +1/sqrt(fan_in))."""
    kw, kb = jax.random.split(key)
    bound = 1.0 / math.sqrt(fan_in)
    w = jax.random.uniform(kw, (fan_out, fan_in), jnp.float32, -bound, bound)  # (out, in)
    b = jax.random.uniform(kb, (fan_out, 1), jnp.float32, -bound, bound)       # (out, 1)
    return w, b


def init_params(key):
    k1, k2, k3, k4 = jax.random.split(key, 4)
    return (init_linear(k1, D_IN, D_H1),
            init_linear(k2, D_H1, D_H2),
            init_linear(k3, D_H2, D_H3),
            init_linear(k4, D_H3, D_OUT))


def mlp_reference(x, params, matmul_dtype=jnp.float32):
    h = x.astype(jnp.float32)
    layers = list(params)
    for idx, (w, b) in enumerate(layers):
        z = jnp.dot(h.astype(matmul_dtype), w.T.astype(matmul_dtype),
                    preferred_element_type=jnp.float32) + b.reshape(1, -1)
        h = z if idx == len(layers) - 1 else jax.nn.sigmoid(z)
    return h


if __name__ == "__main__":
    key = jax.random.PRNGKey(0)
    k_params, k_x = jax.random.split(key)

    params = init_params(k_params)
    batch = 16
    x = jax.random.normal(k_x, (batch, D_IN), jnp.float32)

    out = jax.block_until_ready(mlp_forward(x, params))
    assert out.shape == (batch, 1), out.shape

    # Same bf16-matmul math as the kernel: tight tolerance.
    ref_bf16 = mlp_reference(x, params, jnp.bfloat16)
    assert jnp.allclose(out, ref_bf16, atol=1e-3, rtol=1e-3), "mismatch vs bf16 reference"

    # Pure f32 reference: loose tolerance accounts for bf16 MXU operands.
    ref_f32 = mlp_reference(x, params, jnp.float32)
    assert jnp.allclose(out, ref_f32, atol=2e-2, rtol=2e-2), "mismatch vs f32 reference"

    print("KERNEL_OK")
</pallas_src>

<mosaic_0001>
module attributes {stable_mosaic.version = 11 : i64} {
  func.func @_mlp_kernel(%arg0: i32, %arg1: memref<10x128xf32, #tpu.memory_space<vmem>>, %arg2: memref<200x10xf32, #tpu.memory_space<vmem>>, %arg3: memref<200x1xf32, #tpu.memory_space<vmem>>, %arg4: memref<30x200xf32, #tpu.memory_space<vmem>>, %arg5: memref<30x1xf32, #tpu.memory_space<vmem>>, %arg6: memref<10x30xf32, #tpu.memory_space<vmem>>, %arg7: memref<10x1xf32, #tpu.memory_space<vmem>>, %arg8: memref<1x10xf32, #tpu.memory_space<vmem>>, %arg9: memref<1x1xf32, #tpu.memory_space<vmem>>, %arg10: memref<1x128xf32, #tpu.memory_space<vmem>>) attributes {dimension_semantics = [#tpu.dimension_semantics<parallel>], iteration_bounds = array<i64: 1>, scalar_prefetch = 0 : i64, scratch_operands = 0 : i64, tpu.core_type = #tpu.core_type<tc>, window_params = [{transform_indices = @transform_0, window_bounds = array<i64: 10, 128>}, {pipeline_mode = #tpu.pipeline_mode<synchronous>, transform_indices = @transform_1, window_bounds = array<i64: 200, 10>}, {pipeline_mode = #tpu.pipeline_mode<synchronous>, transform_indices = @transform_2, window_bounds = array<i64: 200, 1>}, {pipeline_mode = #tpu.pipeline_mode<synchronous>, transform_indices = @transform_3, window_bounds = array<i64: 30, 200>}, {pipeline_mode = #tpu.pipeline_mode<synchronous>, transform_indices = @transform_4, window_bounds = array<i64: 30, 1>}, {pipeline_mode = #tpu.pipeline_mode<synchronous>, transform_indices = @transform_5, window_bounds = array<i64: 10, 30>}, {pipeline_mode = #tpu.pipeline_mode<synchronous>, transform_indices = @transform_6, window_bounds = array<i64: 10, 1>}, {pipeline_mode = #tpu.pipeline_mode<synchronous>, transform_indices = @transform_7, window_bounds = array<i64: 1, 10>}, {pipeline_mode = #tpu.pipeline_mode<synchronous>, transform_indices = @transform_8, window_bounds = array<i64: 1, 1>}, {transform_indices = @transform_9, window_bounds = array<i64: 1, 128>}]} {
    %c0 = arith.constant 0 : index
    %c0_0 = arith.constant 0 : index
    %0 = vector.load %arg1[%c0, %c0_0] : memref<10x128xf32, #tpu.memory_space<vmem>>, vector<10x128xf32>
    %c0_1 = arith.constant 0 : index
    %c0_2 = arith.constant 0 : index
    %1 = vector.load %arg2[%c0_1, %c0_2] : memref<200x10xf32, #tpu.memory_space<vmem>>, vector<200x10xf32>
    %2 = arith.truncf %1 : vector<200x10xf32> to vector<200x10xbf16>
    %3 = arith.truncf %0 : vector<10x128xf32> to vector<10x128xbf16>
    %cst = arith.constant dense<0.000000e+00> : vector<200x128xf32>
    %4 = tpu.matmul %2, %3, %cst {dimension_numbers = #tpu.dot_dimension_numbers<[1], [0], [0], [1], [0, 0, 1, 1], [], []>} : vector<200x10xbf16>, vector<10x128xbf16>, vector<200x128xf32> -> vector<200x128xf32>
    %c0_3 = arith.constant 0 : index
    %c0_4 = arith.constant 0 : index
    %5 = vector.load %arg3[%c0_3, %c0_4] : memref<200x1xf32, #tpu.memory_space<vmem>>, vector<200x1xf32>
    %6 = vector.broadcast %5 : vector<200x1xf32> to vector<200x128xf32>
    %7 = arith.addf %4, %6 : vector<200x128xf32>
    %8 = arith.negf %7 : vector<200x128xf32>
    %9 = math.exp %8 : vector<200x128xf32>
    %cst_5 = arith.constant 1.000000e+00 : f32
    %10 = vector.broadcast %cst_5 : f32 to vector<200x128xf32>
    %11 = arith.addf %10, %9 : vector<200x128xf32>
    %12 = arith.divf %10, %11 : vector<200x128xf32>
    %c0_6 = arith.constant 0 : index
    %c0_7 = arith.constant 0 : index
    %13 = vector.load %arg4[%c0_6, %c0_7] : memref<30x200xf32, #tpu.memory_space<vmem>>, vector<30x200xf32>
    %14 = arith.truncf %13 : vector<30x200xf32> to vector<30x200xbf16>
    %15 = arith.truncf %12 : vector<200x128xf32> to vector<200x128xbf16>
    %cst_8 = arith.constant dense<0.000000e+00> : vector<30x128xf32>
    %16 = tpu.matmul %14, %15, %cst_8 {dimension_numbers = #tpu.dot_dimension_numbers<[1], [0], [0], [1], [0, 0, 1, 1], [], []>} : vector<30x200xbf16>, vector<200x128xbf16>, vector<30x128xf32> -> vector<30x128xf32>
    %c0_9 = arith.constant 0 : index
    %c0_10 = arith.constant 0 : index
    %17 = vector.load %arg5[%c0_9, %c0_10] : memref<30x1xf32, #tpu.memory_space<vmem>>, vector<30x1xf32>
    %18 = vector.broadcast %17 : vector<30x1xf32> to vector<30x128xf32>
    %19 = arith.addf %16, %18 : vector<30x128xf32>
    %20 = arith.negf %19 : vector<30x128xf32>
    %21 = math.exp %20 : vector<30x128xf32>
    %cst_11 = arith.constant 1.000000e+00 : f32
    %22 = vector.broadcast %cst_11 : f32 to vector<30x128xf32>
    %23 = arith.addf %22, %21 : vector<30x128xf32>
    %24 = arith.divf %22, %23 : vector<30x128xf32>
    %c0_12 = arith.constant 0 : index
    %c0_13 = arith.constant 0 : index
    %25 = vector.load %arg6[%c0_12, %c0_13] : memref<10x30xf32, #tpu.memory_space<vmem>>, vector<10x30xf32>
    %26 = arith.truncf %25 : vector<10x30xf32> to vector<10x30xbf16>
    %27 = arith.truncf %24 : vector<30x128xf32> to vector<30x128xbf16>
    %cst_14 = arith.constant dense<0.000000e+00> : vector<10x128xf32>
    %28 = tpu.matmul %26, %27, %cst_14 {dimension_numbers = #tpu.dot_dimension_numbers<[1], [0], [0], [1], [0, 0, 1, 1], [], []>} : vector<10x30xbf16>, vector<30x128xbf16>, vector<10x128xf32> -> vector<10x128xf32>
    %c0_15 = arith.constant 0 : index
    %c0_16 = arith.constant 0 : index
    %29 = vector.load %arg7[%c0_15, %c0_16] : memref<10x1xf32, #tpu.memory_space<vmem>>, vector<10x1xf32>
    %30 = vector.broadcast %29 : vector<10x1xf32> to vector<10x128xf32>
    %31 = arith.addf %28, %30 : vector<10x128xf32>
    %32 = arith.negf %31 : vector<10x128xf32>
    %33 = math.exp %32 : vector<10x128xf32>
    %cst_17 = arith.constant 1.000000e+00 : f32
    %34 = vector.broadcast %cst_17 : f32 to vector<10x128xf32>
    %35 = arith.addf %34, %33 : vector<10x128xf32>
    %36 = arith.divf %34, %35 : vector<10x128xf32>
    %c0_18 = arith.constant 0 : index
    %c0_19 = arith.constant 0 : index
    %37 = vector.load %arg8[%c0_18, %c0_19] : memref<1x10xf32, #tpu.memory_space<vmem>>, vector<1x10xf32>
    %38 = arith.truncf %37 : vector<1x10xf32> to vector<1x10xbf16>
    %39 = arith.truncf %36 : vector<10x128xf32> to vector<10x128xbf16>
    %cst_20 = arith.constant dense<0.000000e+00> : vector<1x128xf32>
    %40 = tpu.matmul %38, %39, %cst_20 {dimension_numbers = #tpu.dot_dimension_numbers<[1], [0], [0], [1], [0, 0, 1, 1], [], []>} : vector<1x10xbf16>, vector<10x128xbf16>, vector<1x128xf32> -> vector<1x128xf32>
    %c0_21 = arith.constant 0 : index
    %c0_22 = arith.constant 0 : index
    %41 = vector.load %arg9[%c0_21, %c0_22] : memref<1x1xf32, #tpu.memory_space<vmem>>, vector<1x1xf32>
    %42 = vector.broadcast %41 : vector<1x1xf32> to vector<1x128xf32>
    %43 = arith.addf %40, %42 : vector<1x128xf32>
    %c0_23 = arith.constant 0 : index
    %c0_24 = arith.constant 0 : index
    %44 = vector.load %arg10[%c0_23, %c0_24] : memref<1x128xf32, #tpu.memory_space<vmem>>, vector<1x128xf32>
    tpu.vector_store %arg10[%c0_23, %c0_24], %43 {strides = array<i32>} : memref<1x128xf32, #tpu.memory_space<vmem>>, vector<1x128xf32>,
    return
  }
  func.func @transform_0(%arg0: i32) -> (i32, i32) {
    %c0_i32 = arith.constant 0 : i32
    %c0_i32_0 = arith.constant 0 : i32
    return %c0_i32, %arg0 : i32, i32
  }
  func.func @transform_1(%arg0: i32) -> (i32, i32) {
    %c0_i32 = arith.constant 0 : i32
    %c0_i32_0 = arith.constant 0 : i32
    %c0_i32_1 = arith.constant 0 : i32
    return %c0_i32, %c0_i32_0 : i32, i32
  }
  func.func @transform_2(%arg0: i32) -> (i32, i32) {
    %c0_i32 = arith.constant 0 : i32
    %c0_i32_0 = arith.constant 0 : i32
    %c0_i32_1 = arith.constant 0 : i32
    return %c0_i32, %c0_i32_0 : i32, i32
  }
  func.func @transform_3(%arg0: i32) -> (i32, i32) {
    %c0_i32 = arith.constant 0 : i32
    %c0_i32_0 = arith.constant 0 : i32
    %c0_i32_1 = arith.constant 0 : i32
    return %c0_i32, %c0_i32_0 : i32, i32
  }
  func.func @transform_4(%arg0: i32) -> (i32, i32) {
    %c0_i32 = arith.constant 0 : i32
    %c0_i32_0 = arith.constant 0 : i32
    %c0_i32_1 = arith.constant 0 : i32
    return %c0_i32, %c0_i32_0 : i32, i32
  }
  func.func @transform_5(%arg0: i32) -> (i32, i32) {
    %c0_i32 = arith.constant 0 : i32
    %c0_i32_0 = arith.constant 0 : i32
    %c0_i32_1 = arith.constant 0 : i32
    return %c0_i32, %c0_i32_0 : i32, i32
  }
  func.func @transform_6(%arg0: i32) -> (i32, i32) {
    %c0_i32 = arith.constant 0 : i32
    %c0_i32_0 = arith.constant 0 : i32
    %c0_i32_1 = arith.constant 0 : i32
    return %c0_i32, %c0_i32_0 : i32, i32
  }
  func.func @transform_7(%arg0: i32) -> (i32, i32) {
    %c0_i32 = arith.constant 0 : i32
    %c0_i32_0 = arith.constant 0 : i32
    %c0_i32_1 = arith.constant 0 : i32
    return %c0_i32, %c0_i32_0 : i32, i32
  }
  func.func @transform_8(%arg0: i32) -> (i32, i32) {
    %c0_i32 = arith.constant 0 : i32
    %c0_i32_0 = arith.constant 0 : i32
    %c0_i32_1 = arith.constant 0 : i32
    return %c0_i32, %c0_i32_0 : i32, i32
  }
  func.func @transform_9(%arg0: i32) -> (i32, i32) {
    %c0_i32 = arith.constant 0 : i32
    %c0_i32_0 = arith.constant 0 : i32
    return %c0_i32, %arg0 : i32, i32
  }
}

</mosaic_0001>

<llo_original>
// kernel: tpu_custom_call.1
$region0: #{tpu_custom_call.1}
  #allocation0 [shape = 'u32[]', space=smem, size = 0x4, offset = 0x4, fixed_abs, tag = 'smem constant byte address 0x4 - core index']
  #allocation1 [shape = 'u32[144,128]{1,0:T(1,128)}', space=vmem, size = 0x12000, scoped, tag = 'internal scratch']
  #allocation2 [shape = 'f32[1,1]{1,0:T(1,128)S(1)}', space=vmem, size = 0x200, scoped, tag = 'scoped memory for tpu_custom_call.1']
  %s0 = inlined_call_operand.vmem [shape: f32[10,128], index: 0, kind: input, shape index: {}]
  %s1 = inlined_call_operand.vmem [shape: f32[200,10], index: 1, kind: input, shape index: {}]
  %s2 = inlined_call_operand.vmem [shape: f32[200,1], index: 2, kind: input, shape index: {}]
  %s3 = inlined_call_operand.vmem [shape: f32[30,200], index: 3, kind: input, shape index: {}]
  %s4 = inlined_call_operand.vmem [shape: f32[30,1], index: 4, kind: input, shape index: {}]
  %s5 = inlined_call_operand.vmem [shape: f32[10,30], index: 5, kind: input, shape index: {}]
  %s6 = inlined_call_operand.vmem [shape: f32[10,1], index: 6, kind: input, shape index: {}]
  %s7 = inlined_call_operand.vmem [shape: f32[1,10], index: 7, kind: input, shape index: {}]
  %s8 = inlined_call_operand.<no memory space> [shape: f32[1,1], index: 8, kind: input, shape index: {}]
  %s9 = inlined_call_operand.hbm [shape: f32[1,128], index: 9, kind: output, shape index: {}]
  %s10 = sld [smem:[#allocation0]]
  $region46: #{tpu_custom_call.1} parent=0
    _
  %s12 = ssub.s32 1, %s10
  %s13 = scalar_select 0, %s12, %s10
  %v14 = vstv %s8
  %15 = vst [vmem:[#allocation2] sm:$0x1] %v14
  $region1: #{tpu_custom_call.1} parent=0
    #allocation3 [shape = 'u8[512]{0}', space=vmem, size = 0x400, scoped, tag = 'output window, operand 0, single buffered']
    #allocation4 [shape = 's32[1]{0}', space=sflag, size = 0x4, scoped, tag = 'scoped memory for tpu_custom_call.1']
    %16 = vsyncpa [#allocation4], 0
    // Predicated region
    $region2: #{tpu_custom_call.1} parent=1 // pred_check
      _
    $region3: #{tpu_custom_call.1} parent=1 // pred_check_branch
      %18 = sbr.rel (0) target = $region5
    $region4: #{tpu_custom_call.1} parent=1 // pred_region
      _
    $region5: #{tpu_custom_call.1} parent=1 // pred_fallthru
      _
    // Predicated region
    $region6: #{tpu_custom_call.1} parent=1 // pred_check
      _
    $region7: #{tpu_custom_call.1} parent=1 // pred_check_branch
      %20 = sbr.rel (0) target = $region9
    $region8: #{tpu_custom_call.1} parent=1 // pred_region
      _
    $region9: #{tpu_custom_call.1} parent=1 // pred_fallthru
      _
    // Predicated region
    $region10: #{tpu_custom_call.1} parent=1 // pred_check
      _
    $region11: #{tpu_custom_call.1} parent=1 // pred_check_branch
      %22 = sbr.rel (0) target = $region13
    $region12: #{tpu_custom_call.1} parent=1 // pred_region
      _
    $region13: #{tpu_custom_call.1} parent=1 // pred_fallthru
      _
    // Predicated region
    $region14: #{tpu_custom_call.1} parent=1 // pred_check
      _
    $region15: #{tpu_custom_call.1} parent=1 // pred_check_branch
      %24 = sbr.rel (0) target = $region17
    $region16: #{tpu_custom_call.1} parent=1 // pred_region
      _
    $region17: #{tpu_custom_call.1} parent=1 // pred_fallthru
      _
    // Predicated region
    $region18: #{tpu_custom_call.1} parent=1 // pred_check
      _
    $region19: #{tpu_custom_call.1} parent=1 // pred_check_branch
      %26 = sbr.rel (0) target = $region21
    $region20: #{tpu_custom_call.1} parent=1 // pred_region
      _
    $region21: #{tpu_custom_call.1} parent=1 // pred_fallthru
      _
    // Predicated region
    $region22: #{tpu_custom_call.1} parent=1 // pred_check
      _
    $region23: #{tpu_custom_call.1} parent=1 // pred_check_branch
      %28 = sbr.rel (0) target = $region25
    $region24: #{tpu_custom_call.1} parent=1 // pred_region
      _
    $region25: #{tpu_custom_call.1} parent=1 // pred_fallthru
      _
    // Predicated region
    $region26: #{tpu_custom_call.1} parent=1 // pred_check
      _
    $region27: #{tpu_custom_call.1} parent=1 // pred_check_branch
      %30 = sbr.rel (0) target = $region29
    $region28: #{tpu_custom_call.1} parent=1 // pred_region
      _
    $region29: #{tpu_custom_call.1} parent=1 // pred_fallthru
      _
    // Predicated region
    $region30: #{tpu_custom_call.1} parent=1 // pred_check
      _
    $region31: #{tpu_custom_call.1} parent=1 // pred_check_branch
      %32 = sbr.rel (0) target = $region33
    $region32: #{tpu_custom_call.1} parent=1 // pred_region
      _
    $region33: #{tpu_custom_call.1} parent=1 // pred_fallthru
      _
    // Predicated region
    $region34: #{tpu_custom_call.1} parent=1 // pred_check
      _
    $region35: #{tpu_custom_call.1} parent=1 // pred_check_branch
      %34 = sbr.rel (0) target = $region37
    $region36: #{tpu_custom_call.1} parent=1 // pred_region
      _
    $region37: #{tpu_custom_call.1} parent=1 // pred_fallthru
      _
    %v36 = vld [vmem:[%s0] sm:$0xff]
    %v37 = vld [vmem:[%s0 + $0x8] sm:$0x3]
    %v38 = vld [vmem:[%s1] sm:$0xff]
    %v39 = vld [vmem:[%s1 + $0x8] sm:$0xff]
    %v40 = vld [vmem:[%s1 + $0x10] sm:$0xff]
    %v41 = vld [vmem:[%s1 + $0x18] sm:$0xff]
    %v42 = vld [vmem:[%s1 + $0x20] sm:$0xff]
    %v43 = vld [vmem:[%s1 + $0x28] sm:$0xff]
    %v44 = vld [vmem:[%s1 + $0x30] sm:$0xff]
    %v45 = vld [vmem:[%s1 + $0x38] sm:$0xff]
    %v46 = vld [vmem:[%s1 + $0x40] sm:$0xff]
    %v47 = vld [vmem:[%s1 + $0x48] sm:$0xff]
    %v48 = vld [vmem:[%s1 + $0x50] sm:$0xff]
    %v49 = vld [vmem:[%s1 + $0x58] sm:$0xff]
    %v50 = vld [vmem:[%s1 + $0x60] sm:$0xff]
    %v51 = vld [vmem:[%s1 + $0x68] sm:$0xff]
    %v52 = vld [vmem:[%s1 + $0x70] sm:$0xff]
    %v53 = vld [vmem:[%s1 + $0x78] sm:$0xff]
    %v54 = vld [vmem:[%s1 + $0x80] sm:$0xff]
    %v55 = vld [vmem:[%s1 + $0x88] sm:$0xff]
    %v56 = vld [vmem:[%s1 + $0x90] sm:$0xff]
    %v57 = vld [vmem:[%s1 + $0x98] sm:$0xff]
    %v58 = vld [vmem:[%s1 + $0xa0] sm:$0xff]
    %v59 = vld [vmem:[%s1 + $0xa8] sm:$0xff]
    %v60 = vld [vmem:[%s1 + $0xb0] sm:$0xff]
    %v61 = vld [vmem:[%s1 + $0xb8] sm:$0xff]
    %v62 = vld [vmem:[%s1 + $0xc0] sm:$0xff]
    %v63 = vpack.c.bf16 %v39, %v38
    %v64 = vpack.c.bf16 %v41, %v40
    %v65 = vpack.c.bf16 %v43, %v42
    %v66 = vpack.c.bf16 %v45, %v44
    %v67 = vpack.c.bf16 %v47, %v46
    %v68 = vpack.c.bf16 %v49, %v48
    %v69 = vpack.c.bf16 %v51, %v50
    %v70 = vpack.c.bf16 %v53, %v52
    %v71 = vpack.c.bf16 %v55, %v54
    %v72 = vpack.c.bf16 %v57, %v56
    %v73 = vpack.c.bf16 %v59, %v58
    %v74 = vpack.c.bf16 %v61, %v60
    %v75 = vpack.c.bf16 %v62, %v62
    %v76 = vpack.c.bf16 %v37, %v36
    %v77 = vld [vmem:[%s2] sm:$0xff]
    %v78 = vld [vmem:[%s2 + $0x8] sm:$0xff]
    %v79 = vld [vmem:[%s2 + $0x10] sm:$0xff]
    %v80 = vld [vmem:[%s2 + $0x18] sm:$0xff]
    %v81 = vld [vmem:[%s2 + $0x20] sm:$0xff]
    %v82 = vld [vmem:[%s2 + $0x28] sm:$0xff]
    %v83 = vld [vmem:[%s2 + $0x30] sm:$0xff]
    %v84 = vld [vmem:[%s2 + $0x38] sm:$0xff]
    %v85 = vld [vmem:[%s2 + $0x40] sm:$0xff]
    %v86 = vld [vmem:[%s2 + $0x48] sm:$0xff]
    %v87 = vld [vmem:[%s2 + $0x50] sm:$0xff]
    %v88 = vld [vmem:[%s2 + $0x58] sm:$0xff]
    %v89 = vld [vmem:[%s2 + $0x60] sm:$0xff]
    %v90 = vld [vmem:[%s2 + $0x68] sm:$0xff]
    %v91 = vld [vmem:[%s2 + $0x70] sm:$0xff]
    %v92 = vld [vmem:[%s2 + $0x78] sm:$0xff]
    %v93 = vld [vmem:[%s2 + $0x80] sm:$0xff]
    %v94 = vld [vmem:[%s2 + $0x88] sm:$0xff]
    %v95 = vld [vmem:[%s2 + $0x90] sm:$0xff]
    %v96 = vld [vmem:[%s2 + $0x98] sm:$0xff]
    %v97 = vld [vmem:[%s2 + $0xa0] sm:$0xff]
    %v98 = vld [vmem:[%s2 + $0xa8] sm:$0xff]
    %v99 = vld [vmem:[%s2 + $0xb0] sm:$0xff]
    %v100 = vld [vmem:[%s2 + $0xb8] sm:$0xff]
    %v101 = vld [vmem:[%s2 + $0xc0] sm:$0xff]
    %103 = vset.pattern.permute.xlu0 0
    %104 = vperm.xlu0 %103, %v77
    %v105 = vpop.permute.xlu0 %104
    %108 = vset.pattern.permute.xlu0 0
    %109 = vperm.xlu0 %108, %v78
    %v110 = vpop.permute.xlu0 %109
    %113 = vset.pattern.permute.xlu0 0
    %114 = vperm.xlu0 %113, %v79
    %v115 = vpop.permute.xlu0 %114
    %118 = vset.pattern.permute.xlu0 0
    %119 = vperm.xlu0 %118, %v80
    %v120 = vpop.permute.xlu0 %119
    %123 = vset.pattern.permute.xlu0 0
    %124 = vperm.xlu0 %123, %v81
    %v125 = vpop.permute.xlu0 %124
    %128 = vset.pattern.permute.xlu0 0
    %129 = vperm.xlu0 %128, %v82
    %v130 = vpop.permute.xlu0 %129
    %133 = vset.pattern.permute.xlu0 0
    %134 = vperm.xlu0 %133, %v83
    %v135 = vpop.permute.xlu0 %134
    %138 = vset.pattern.permute.xlu0 0
    %139 = vperm.xlu0 %138, %v84
    %v140 = vpop.permute.xlu0 %139
    %143 = vset.pattern.permute.xlu0 0
    %144 = vperm.xlu0 %143, %v85
    %v145 = vpop.permute.xlu0 %144
    %148 = vset.pattern.permute.xlu0 0
    %149 = vperm.xlu0 %148, %v86
    %v150 = vpop.permute.xlu0 %149
    %153 = vset.pattern.permute.xlu0 0
    %154 = vperm.xlu0 %153, %v87
    %v155 = vpop.permute.xlu0 %154
    %158 = vset.pattern.permute.xlu0 0
    %159 = vperm.xlu0 %158, %v88
    %v160 = vpop.permute.xlu0 %159
    %163 = vset.pattern.permute.xlu0 0
    %164 = vperm.xlu0 %163, %v89
    %v165 = vpop.permute.xlu0 %164
    %168 = vset.pattern.permute.xlu0 0
    %169 = vperm.xlu0 %168, %v90
    %v170 = vpop.permute.xlu0 %169
    %173 = vset.pattern.permute.xlu0 0
    %174 = vperm.xlu0 %173, %v91
    %v175 = vpop.permute.xlu0 %174
    %178 = vset.pattern.permute.xlu0 0
    %179 = vperm.xlu0 %178, %v92
    %v180 = vpop.permute.xlu0 %179
    %183 = vset.pattern.permute.xlu0 0
    %184 = vperm.xlu0 %183, %v93
    %v185 = vpop.permute.xlu0 %184
    %188 = vset.pattern.permute.xlu0 0
    %189 = vperm.xlu0 %188, %v94
    %v190 = vpop.permute.xlu0 %189
    %193 = vset.pattern.permute.xlu0 0
    %194 = vperm.xlu0 %193, %v95
    %v195 = vpop.permute.xlu0 %194
    %198 = vset.pattern.permute.xlu0 0
    %199 = vperm.xlu0 %198, %v96
    %v200 = vpop.permute.xlu0 %199
    %203 = vset.pattern.permute.xlu0 0
    %204 = vperm.xlu0 %203, %v97
    %v205 = vpop.permute.xlu0 %204
    %208 = vset.pattern.permute.xlu0 0
    %209 = vperm.xlu0 %208, %v98
    %v210 = vpop.permute.xlu0 %209
    %213 = vset.pattern.permute.xlu0 0
    %214 = vperm.xlu0 %213, %v99
    %v215 = vpop.permute.xlu0 %214
    %218 = vset.pattern.permute.xlu0 0
    %219 = vperm.xlu0 %218, %v100
    %v220 = vpop.permute.xlu0 %219
    %223 = vset.pattern.permute.xlu0 0
    %224 = vperm.xlu0 %223, %v101
    %v225 = vpop.permute.xlu0 %224
    %vm227 = vcmask 80896
    %v229 = vsel %vm227, %v63, 0
    %v232 = vsel %vm227, %v64, 0
    %v235 = vsel %vm227, %v65, 0
    %v238 = vsel %vm227, %v66, 0
    %v241 = vsel %vm227, %v67, 0
    %v244 = vsel %vm227, %v68, 0
    %v247 = vsel %vm227, %v69, 0
    %v250 = vsel %vm227, %v70, 0
    %v253 = vsel %vm227, %v71, 0
    %v256 = vsel %vm227, %v72, 0
    %v259 = vsel %vm227, %v73, 0
    %v262 = vsel %vm227, %v74, 0
    %v265 = vsel %vm227, %v75, 0
    %vm267 = vcmask 1044480
    %v269 = vsel %vm267, %v76, 0
    %271 = vmatprep.subr.bf16.mxu0 0
    %272 = vmatpush1.bf16.msra.mxu0 %v269
    %273 = vmatprep.subr.bf16.mxu0 0
    %274 = vmatpush1.bf16.msra.mxu0 0
    %275 = vmatprep.subr.bf16.mxu0 0
    %276 = vmatpush1.bf16.msra.mxu0 0
    %277 = vmatprep.subr.bf16.mxu0 0
    %278 = vmatpush1.bf16.msra.mxu0 0
    %279 = vmatprep.subr.bf16.mxu0 0
    %280 = vmatpush1.bf16.msra.mxu0 0
    %281 = vmatprep.subr.bf16.mxu0 0
    %282 = vmatpush1.bf16.msra.mxu0 0
    %283 = vmatprep.subr.bf16.mxu0 0
    %284 = vmatpush1.bf16.msra.mxu0 0
    %285 = vmatprep.subr.bf16.mxu0 0
    %286 = vmatpush1.bf16.msra.mxu0 0
    %287 = vmatprep.subr.bf16.mxu0 0
    %288 = vmatpush1.bf16.msra.mxu0 0
    %289 = vmatprep.subr.bf16.mxu0 0
    %290 = vmatpush1.bf16.msra.mxu0 0
    %291 = vmatprep.subr.bf16.mxu0 0
    %292 = vmatpush1.bf16.msra.mxu0 0
    %293 = vmatprep.subr.bf16.mxu0 0
    %294 = vmatpush1.bf16.msra.mxu0 0
    %295 = vmatprep.subr.bf16.mxu0 0
    %296 = vmatpush1.bf16.msra.mxu0 0
    %297 = vmatprep.subr.bf16.mxu0 0
    %298 = vmatpush1.bf16.msra.mxu0 0
    %299 = vmatprep.subr.bf16.mxu0 0
    %300 = vmatpush1.bf16.msra.mxu0 0
    %301 = vmatprep.subr.bf16.mxu0 0
    %302 = vmatpush1.bf16.msra.mxu0 0
    %303 = vmatprep.mubr.bf16.mxu0 0
    %304 = vmatmul.mubr.bf16.gmra.mrb[0].mxu0 %v229
    %v305 = vpop.f32.mrb[0].mxu0
    %v306 = vadd.f32 %v105, %v305
    %v307 = vpop.f32.mrb[0].mxu0
    %v308 = vpop.f32.mrb[0].mxu0
    %v309 = vadd.f32 %v110, %v308
    %v310 = vpop.f32.mrb[0].mxu0
    %311 = vmatprep.mubr.bf16.mxu0 0
    %312 = vmatmul.mubr.bf16.gmra.mrb[0].mxu0 %v232
    %v313 = vpop.f32.mrb[0].mxu0
    %v314 = vadd.f32 %v115, %v313
    %v315 = vpop.f32.mrb[0].mxu0
    %v316 = vpop.f32.mrb[0].mxu0
    %v317 = vadd.f32 %v120, %v316
    %v318 = vpop.f32.mrb[0].mxu0
    %319 = vmatprep.mubr.bf16.mxu0 0
    %320 = vmatmul.mubr.bf16.gmra.mrb[0].mxu0 %v235
    %v321 = vpop.f32.mrb[0].mxu0
    %v322 = vadd.f32 %v125, %v321
    %v323 = vpop.f32.mrb[0].mxu0
    %v324 = vpop.f32.mrb[0].mxu0
    %v325 = vadd.f32 %v130, %v324
    %v326 = vpop.f32.mrb[0].mxu0
    %327 = vmatprep.mubr.bf16.mxu0 0
    %328 = vmatmul.mubr.bf16.gmra.mrb[0].mxu0 %v238
    %v329 = vpop.f32.mrb[0].mxu0
    %v330 = vadd.f32 %v135, %v329
    %v331 = vpop.f32.mrb[0].mxu0
    %v332 = vpop.f32.mrb[0].mxu0
    %v333 = vadd.f32 %v140, %v332
    %v334 = vpop.f32.mrb[0].mxu0
    %335 = vmatprep.mubr.bf16.mxu0 0
    %336 = vmatmul.mubr.bf16.gmra.mrb[0].mxu0 %v241
    %v337 = vpop.f32.mrb[0].mxu0
    %v338 = vadd.f32 %v145, %v337
    %v339 = vpop.f32.mrb[0].mxu0
    %v340 = vpop.f32.mrb[0].mxu0
    %v341 = vadd.f32 %v150, %v340
    %v342 = vpop.f32.mrb[0].mxu0
    %343 = vmatprep.mubr.bf16.mxu0 0
    %344 = vmatmul.mubr.bf16.gmra.mrb[0].mxu0 %v244
    %v345 = vpop.f32.mrb[0].mxu0
    %v346 = vadd.f32 %v155, %v345
    %v347 = vpop.f32.mrb[0].mxu0
    %v348 = vpop.f32.mrb[0].mxu0
    %v349 = vadd.f32 %v160, %v348
    %v350 = vpop.f32.mrb[0].mxu0
    %351 = vmatprep.mubr.bf16.mxu0 0
    %352 = vmatmul.mubr.bf16.gmra.mrb[0].mxu0 %v247
    %v353 = vpop.f32.mrb[0].mxu0
    %v354 = vadd.f32 %v165, %v353
    %v355 = vpop.f32.mrb[0].mxu0
    %v356 = vpop.f32.mrb[0].mxu0
    %v357 = vadd.f32 %v170, %v356
    %v358 = vpop.f32.mrb[0].mxu0
    %359 = vmatprep.mubr.bf16.mxu0 0
    %360 = vmatmul.mubr.bf16.gmra.mrb[0].mxu0 %v250
    %v361 = vpop.f32.mrb[0].mxu0
    %v362 = vadd.f32 %v175, %v361
    %v363 = vpop.f32.mrb[0].mxu0
    %v364 = vpop.f32.mrb[0].mxu0
    %v365 = vadd.f32 %v180, %v364
    %v366 = vpop.f32.mrb[0].mxu0
    %367 = vmatprep.mubr.bf16.mxu0 0
    %368 = vmatmul.mubr.bf16.gmra.mrb[0].mxu0 %v253
    %v369 = vpop.f32.mrb[0].mxu0
    %v370 = vadd.f32 %v185, %v369
    %v371 = vpop.f32.mrb[0].mxu0
    %v372 = vpop.f32.mrb[0].mxu0
    %v373 = vadd.f32 %v190, %v372
    %v374 = vpop.f32.mrb[0].mxu0
    %375 = vmatprep.mubr.bf16.mxu0 0
    %376 = vmatmul.mubr.bf16.gmra.mrb[0].mxu0 %v256
    %v377 = vpop.f32.mrb[0].mxu0
    %v378 = vadd.f32 %v195, %v377
    %v379 = vpop.f32.mrb[0].mxu0
    %v380 = vpop.f32.mrb[0].mxu0
    %v381 = vadd.f32 %v200, %v380
    %v382 = vpop.f32.mrb[0].mxu0
    %383 = vmatprep.mubr.bf16.mxu0 0
    %384 = vmatmul.mubr.bf16.gmra.mrb[0].mxu0 %v259
    %v385 = vpop.f32.mrb[0].mxu0
    %v386 = vadd.f32 %v205, %v385
    %v387 = vpop.f32.mrb[0].mxu0
    %v388 = vpop.f32.mrb[0].mxu0
    %v389 = vadd.f32 %v210, %v388
    %v390 = vpop.f32.mrb[0].mxu0
    %391 = vmatprep.mubr.bf16.mxu0 0
    %392 = vmatmul.mubr.bf16.gmra.mrb[0].mxu0 %v262
    %v393 = vpop.f32.mrb[0].mxu0
    %v394 = vadd.f32 %v215, %v393
    %v395 = vpop.f32.mrb[0].mxu0
    %v396 = vpop.f32.mrb[0].mxu0
    %v397 = vadd.f32 %v220, %v396
    %v398 = vpop.f32.mrb[0].mxu0
    %399 = vmatprep.mubr.bf16.mxu0 0
    %400 = vmatmul.mubr.bf16.gmra.mrb[0].mxu0 %v265
    %v401 = vpop.f32.mrb[0].mxu0
    %v402 = vadd.f32 %v225, %v401
    %v403 = vpop.f32.mrb[0].mxu0
    %v404 = vpop.f32.mrb[0].mxu0
    %v405 = vpop.f32.mrb[0].mxu0
    %406 = vdwg.mxu0
    %v407 = vxor.u32 %v306, 2147483648
    %v408 = vxor.u32 %v309, 2147483648
    %v409 = vxor.u32 %v314, 2147483648
    %v410 = vxor.u32 %v317, 2147483648
    %v411 = vxor.u32 %v322, 2147483648
    %v412 = vxor.u32 %v325, 2147483648
    %v413 = vxor.u32 %v330, 2147483648
    %v414 = vxor.u32 %v333, 2147483648
    %v415 = vxor.u32 %v338, 2147483648
    %v416 = vxor.u32 %v341, 2147483648
    %v417 = vxor.u32 %v346, 2147483648
    %v418 = vxor.u32 %v349, 2147483648
    %v419 = vxor.u32 %v354, 2147483648
    %v420 = vxor.u32 %v357, 2147483648
    %v421 = vxor.u32 %v362, 2147483648
    %v422 = vxor.u32 %v365, 2147483648
    %v423 = vxor.u32 %v370, 2147483648
    %v424 = vxor.u32 %v373, 2147483648
    %v425 = vxor.u32 %v378, 2147483648
    %v426 = vxor.u32 %v381, 2147483648
    %v427 = vxor.u32 %v386, 2147483648
    %v428 = vxor.u32 %v389, 2147483648
    %v429 = vxor.u32 %v394, 2147483648
    %v430 = vxor.u32 %v397, 2147483648
    %v431 = vxor.u32 %v402, 2147483648
    %v432 = vmul.f32 %v407, 1.442695
    %v433 = vpow.pop %v432
    %v434 = vmul.f32 %v408, 1.442695
    %v435 = vpow.pop %v434
    %v436 = vmul.f32 %v409, 1.442695
    %v437 = vpow.pop %v436
    %v438 = vmul.f32 %v410, 1.442695
    %v439 = vpow.pop %v438
    %v440 = vmul.f32 %v411, 1.442695
    %v441 = vpow.pop %v440
    %v442 = vmul.f32 %v412, 1.442695
    %v443 = vpow.pop %v442
    %v444 = vmul.f32 %v413, 1.442695
    %v445 = vpow.pop %v444
    %v446 = vmul.f32 %v414, 1.442695
    %v447 = vpow.pop %v446
    %v448 = vmul.f32 %v415, 1.442695
    %v449 = vpow.pop %v448
    %v450 = vmul.f32 %v416, 1.442695
    %v451 = vpow.pop %v450
    %v452 = vmul.f32 %v417, 1.442695
    %v453 = vpow.pop %v452
    %v454 = vmul.f32 %v418, 1.442695
    %v455 = vpow.pop %v454
    %v456 = vmul.f32 %v419, 1.442695
    %v457 = vpow.pop %v456
    %v458 = vmul.f32 %v420, 1.442695
    %v459 = vpow.pop %v458
    %v460 = vmul.f32 %v421, 1.442695
    %v461 = vpow.pop %v460
    %v462 = vmul.f32 %v422, 1.442695
    %v463 = vpow.pop %v462
    %v464 = vmul.f32 %v423, 1.442695
    %v465 = vpow.pop %v464
    %v466 = vmul.f32 %v424, 1.442695
    %v467 = vpow.pop %v466
    %v468 = vmul.f32 %v425, 1.442695
    %v469 = vpow.pop %v468
    %v470 = vmul.f32 %v426, 1.442695
    %v471 = vpow.pop %v470
    %v472 = vmul.f32 %v427, 1.442695
    %v473 = vpow.pop %v472
    %v474 = vmul.f32 %v428, 1.442695
    %v475 = vpow.pop %v474
    %v476 = vmul.f32 %v429, 1.442695
    %v477 = vpow.pop %v476
    %v478 = vmul.f32 %v430, 1.442695
    %v479 = vpow.pop %v478
    %v480 = vmul.f32 %v431, 1.442695
    %v481 = vpow.pop %v480
    %v482 = vadd.f32 %v433, 1.0
    %v483 = vadd.f32 %v435, 1.0
    %v484 = vadd.f32 %v437, 1.0
    %v485 = vadd.f32 %v439, 1.0
    %v486 = vadd.f32 %v441, 1.0
    %v487 = vadd.f32 %v443, 1.0
    %v488 = vadd.f32 %v445, 1.0
    %v489 = vadd.f32 %v447, 1.0
    %v490 = vadd.f32 %v449, 1.0
    %v491 = vadd.f32 %v451, 1.0
    %v492 = vadd.f32 %v453, 1.0
    %v493 = vadd.f32 %v455, 1.0
    %v494 = vadd.f32 %v457, 1.0
    %v495 = vadd.f32 %v459, 1.0
    %v496 = vadd.f32 %v461, 1.0
    %v497 = vadd.f32 %v463, 1.0
    %v498 = vadd.f32 %v465, 1.0
    %v499 = vadd.f32 %v467, 1.0
    %v500 = vadd.f32 %v469, 1.0
    %v501 = vadd.f32 %v471, 1.0
    %v502 = vadd.f32 %v473, 1.0
    %v503 = vadd.f32 %v475, 1.0
    %v504 = vadd.f32 %v477, 1.0
    %v505 = vadd.f32 %v479, 1.0
    %v506 = vadd.f32 %v481, 1.0
    %v507 = vrcp.pop %v482
    %v508 = vmul.f32 1.0, %v507
    %v509 = vrcp.pop %v483
    %v510 = vmul.f32 1.0, %v509
    %v511 = vrcp.pop %v484
    %v512 = vmul.f32 1.0, %v511
    %v513 = vrcp.pop %v485
    %v514 = vmul.f32 1.0, %v513
    %v515 = vrcp.pop %v486
    %v516 = vmul.f32 1.0, %v515
    %v517 = vrcp.pop %v487
    %v518 = vmul.f32 1.0, %v517
    %v519 = vrcp.pop %v488
    %v520 = vmul.f32 1.0, %v519
    %v521 = vrcp.pop %v489
    %v522 = vmul.f32 1.0, %v521
    %v523 = vrcp.pop %v490
    %v524 = vmul.f32 1.0, %v523
    %v525 = vrcp.pop %v491
    %v526 = vmul.f32 1.0, %v525
    %v527 = vrcp.pop %v492
    %v528 = vmul.f32 1.0, %v527
    %v529 = vrcp.pop %v493
    %v530 = vmul.f32 1.0, %v529
    %v531 = vrcp.pop %v494
    %v532 = vmul.f32 1.0, %v531
    %v533 = vrcp.pop %v495
    %v534 = vmul.f32 1.0, %v533
    %v535 = vrcp.pop %v496
    %v536 = vmul.f32 1.0, %v535
    %v537 = vrcp.pop %v497
    %v538 = vmul.f32 1.0, %v537
    %v539 = vrcp.pop %v498
    %v540 = vmul.f32 1.0, %v539
    %v541 = vrcp.pop %v499
    %v542 = vmul.f32 1.0, %v541
    %v543 = vrcp.pop %v500
    %v544 = vmul.f32 1.0, %v543
    %v545 = vrcp.pop %v501
    %v546 = vmul.f32 1.0, %v545
    %v547 = vrcp.pop %v502
    %v548 = vmul.f32 1.0, %v547
    %v549 = vrcp.pop %v503
    %v550 = vmul.f32 1.0, %v549
    %v551 = vrcp.pop %v504
    %v552 = vmul.f32 1.0, %v551
    %v553 = vrcp.pop %v505
    %v554 = vmul.f32 1.0, %v553
    %v555 = vrcp.pop %v506
    %v556 = vmul.f32 1.0, %v555
    %v557 = vld [vmem:[%s3] sm:$0xff]
    %v558 = vld [vmem:[%s3 + $0x8] sm:$0xff]
    %v559 = vld [vmem:[%s3 + $0x10] sm:$0xff]
    %v560 = vld [vmem:[%s3 + $0x18] sm:$0xff]
    %v561 = vld [vmem:[%s3 + $0x20] sm:$0xff]
    %v562 = vld [vmem:[%s3 + $0x28] sm:$0xff]
    %v563 = vld [vmem:[%s3 + $0x30] sm:$0x3f]
    %v564 = vld [vmem:[%s3 + $0x38] sm:$0x3f]
    %v565 = vpack.c.bf16 %v559, %v557
    %v566 = vpack.c.bf16 %v560, %v558
    %v567 = vpack.c.bf16 %v563, %v561
    %v568 = vpack.c.bf16 %v564, %v562
    %v569 = vpack.c.bf16 %v510, %v508
    %v570 = vpack.c.bf16 %v514, %v512
    %v571 = vpack.c.bf16 %v518, %v516
    %v572 = vpack.c.bf16 %v522, %v520
    %v573 = vpack.c.bf16 %v526, %v524
    %v574 = vpack.c.bf16 %v530, %v528
    %v575 = vpack.c.bf16 %v534, %v532
    %v576 = vpack.c.bf16 %v538, %v536
    %v577 = vpack.c.bf16 %v542, %v540
    %v578 = vpack.c.bf16 %v546, %v544
    %v579 = vpack.c.bf16 %v550, %v548
    %v580 = vpack.c.bf16 %v554, %v552
    %v581 = vpack.c.bf16 %v556, %v556
    %v582 = vld [vmem:[%s4] sm:$0xff]
    %v583 = vld [vmem:[%s4 + $0x8] sm:$0xff]
    %v584 = vld [vmem:[%s4 + $0x10] sm:$0xff]
    %v585 = vld [vmem:[%s4 + $0x18] sm:$0x3f]
    %587 = vset.pattern.permute.xlu0 0
    %588 = vperm.xlu0 %587, %v582
    %v589 = vpop.permute.xlu0 %588
    %592 = vset.pattern.permute.xlu0 0
    %593 = vperm.xlu0 %592, %v583
    %v594 = vpop.permute.xlu0 %593
    %597 = vset.pattern.permute.xlu0 0
    %598 = vperm.xlu0 %597, %v584
    %v599 = vpop.permute.xlu0 %598
    %602 = vset.pattern.permute.xlu0 0
    %603 = vperm.xlu0 %602, %v585
    %v604 = vpop.permute.xlu0 %603
    %vm606 = vcmask 588800
    %v608 = vsel %vm606, %v566, 0
    %v611 = vsel %vm606, %v568, 0
    %vm613 = vcmask 1043456
    %v615 = vsel %vm613, %v581, 0
    %617 = vmatprep.subr.bf16.mxu0 0
    %618 = vmatpush1.bf16.msra.mxu0 %v569
    %619 = vmatprep.subr.bf16.mxu0 0
    %620 = vmatpush1.bf16.msra.mxu0 %v570
    %621 = vmatprep.subr.bf16.mxu0 0
    %622 = vmatpush1.bf16.msra.mxu0 %v571
    %623 = vmatprep.subr.bf16.mxu0 0
    %624 = vmatpush1.bf16.msra.mxu0 %v572
    %625 = vmatprep.subr.bf16.mxu0 0
    %626 = vmatpush1.bf16.msra.mxu0 %v573
    %627 = vmatprep.subr.bf16.mxu0 0
    %628 = vmatpush1.bf16.msra.mxu0 %v574
    %629 = vmatprep.subr.bf16.mxu0 0
    %630 = vmatpush1.bf16.msra.mxu0 %v575
    %631 = vmatprep.subr.bf16.mxu0 0
    %632 = vmatpush1.bf16.msra.mxu0 %v576
    %633 = vmatprep.subr.bf16.mxu0 0
    %634 = vmatpush1.bf16.msra.mxu0 %v577
    %635 = vmatprep.subr.bf16.mxu0 0
    %636 = vmatpush1.bf16.msra.mxu0 %v578
    %637 = vmatprep.subr.bf16.mxu0 0
    %638 = vmatpush1.bf16.msra.mxu0 %v579
    %639 = vmatprep.subr.bf16.mxu0 0
    %640 = vmatpush1.bf16.msra.mxu0 %v580
    %641 = vmatprep.subr.bf16.mxu0 0
    %642 = vmatpush1.bf16.msra.mxu0 %v615
    %643 = vmatprep.subr.bf16.mxu0 0
    %644 = vmatpush1.bf16.msra.mxu0 0
    %645 = vmatprep.subr.bf16.mxu0 0
    %646 = vmatpush1.bf16.msra.mxu0 0
    %647 = vmatprep.subr.bf16.mxu0 0
    %648 = vmatpush1.bf16.msra.mxu0 0
    %649 = vmatprep.mubr.bf16.mxu0 %v608
    %650 = vmatmul.mubr.bf16.gmra.mrb[0].mxu0 %v565
    %v651 = vpop.f32.mrb[0].mxu0
    %v652 = vadd.f32 %v589, %v651
    %v653 = vpop.f32.mrb[0].mxu0
    %v654 = vpop.f32.mrb[0].mxu0
    %v655 = vadd.f32 %v594, %v654
    %v656 = vpop.f32.mrb[0].mxu0
    %657 = vmatprep.mubr.bf16.mxu0 %v611
    %658 = vmatmul.mubr.bf16.gmra.mrb[0].mxu0 %v567
    %v659 = vpop.f32.mrb[0].mxu0
    %v660 = vadd.f32 %v599, %v659
    %v661 = vpop.f32.mrb[0].mxu0
    %v662 = vpop.f32.mrb[0].mxu0
    %v663 = vadd.f32 %v604, %v662
    %v664 = vpop.f32.mrb[0].mxu0
    %665 = vdwg.mxu0
    %v666 = vxor.u32 %v652, 2147483648
    %v667 = vxor.u32 %v655, 2147483648
    %v668 = vxor.u32 %v660, 2147483648
    %v669 = vxor.u32 %v663, 2147483648
    %v670 = vmul.f32 %v666, 1.442695
    %v671 = vpow.pop %v670
    %v672 = vmul.f32 %v667, 1.442695
    %v673 = vpow.pop %v672
    %v674 = vmul.f32 %v668, 1.442695
    %v675 = vpow.pop %v674
    %v676 = vmul.f32 %v669, 1.442695
    %v677 = vpow.pop %v676
    %v678 = vadd.f32 %v671, 1.0
    %v679 = vadd.f32 %v673, 1.0
    %v680 = vadd.f32 %v675, 1.0
    %v681 = vadd.f32 %v677, 1.0
    %v682 = vrcp.pop %v678
    %v683 = vmul.f32 1.0, %v682
    %v684 = vrcp.pop %v679
    %v685 = vmul.f32 1.0, %v684
    %v686 = vrcp.pop %v680
    %v687 = vmul.f32 1.0, %v686
    %v688 = vrcp.pop %v681
    %v689 = vmul.f32 1.0, %v688
    %v690 = vld [vmem:[%s5] sm:$0xff]
    %v691 = vld [vmem:[%s5 + $0x8] sm:$0x3]
    %v692 = vpack.c.bf16 %v691, %v690
    %v693 = vpack.c.bf16 %v685, %v683
    %v694 = vpack.c.bf16 %v689, %v687
    %v695 = vld [vmem:[%s6] sm:$0xff]
    %v696 = vld [vmem:[%s6 + $0x8] sm:$0x3]
    %698 = vset.pattern.permute.xlu0 0
    %699 = vperm.xlu0 %698, %v695
    %v700 = vpop.permute.xlu0 %699
    %703 = vset.pattern.permute.xlu0 0
    %704 = vperm.xlu0 %703, %v696
    %v705 = vpop.permute.xlu0 %704
    %vm707 = vcmask 244736
    %v709 = vsel %vm707, %v692, 0
    %vm711 = vcmask 1046528
    %v713 = vsel %vm711, %v694, 0
    %715 = vmatprep.subr.bf16.mxu0 0
    %716 = vmatpush1.bf16.msra.mxu0 %v693
    %717 = vmatprep.subr.bf16.mxu0 0
    %718 = vmatpush1.bf16.msra.mxu0 %v713
    %719 = vmatprep.subr.bf16.mxu0 0
    %720 = vmatpush1.bf16.msra.mxu0 0
    %721 = vmatprep.subr.bf16.mxu0 0
    %722 = vmatpush1.bf16.msra.mxu0 0
    %723 = vmatprep.subr.bf16.mxu0 0
    %724 = vmatpush1.bf16.msra.mxu0 0
    %725 = vmatprep.subr.bf16.mxu0 0
    %726 = vmatpush1.bf16.msra.mxu0 0
    %727 = vmatprep.subr.bf16.mxu0 0
    %728 = vmatpush1.bf16.msra.mxu0 0
    %729 = vmatprep.subr.bf16.mxu0 0
    %730 = vmatpush1.bf16.msra.mxu0 0
    %731 = vmatprep.subr.bf16.mxu0 0
    %732 = vmatpush1.bf16.msra.mxu0 0
    %733 = vmatprep.subr.bf16.mxu0 0
    %734 = vmatpush1.bf16.msra.mxu0 0
    %735 = vmatprep.subr.bf16.mxu0 0
    %736 = vmatpush1.bf16.msra.mxu0 0
    %737 = vmatprep.subr.bf16.mxu0 0
    %738 = vmatpush1.bf16.msra.mxu0 0
    %739 = vmatprep.subr.bf16.mxu0 0
    %740 = vmatpush1.bf16.msra.mxu0 0
    %741 = vmatprep.subr.bf16.mxu0 0
    %742 = vmatpush1.bf16.msra.mxu0 0
    %743 = vmatprep.subr.bf16.mxu0 0
    %744 = vmatpush1.bf16.msra.mxu0 0
    %745 = vmatprep.subr.bf16.mxu0 0
    %746 = vmatpush1.bf16.msra.mxu0 0
    %747 = vmatprep.mubr.bf16.mxu0 0
    %748 = vmatmul.mubr.bf16.gmra.mrb[0].mxu0 %v709
    %v749 = vpop.f32.mrb[0].mxu0
    %v750 = vadd.f32 %v700, %v749
    %v751 = vpop.f32.mrb[0].mxu0
    %v752 = vpop.f32.mrb[0].mxu0
    %v753 = vadd.f32 %v705, %v752
    %v754 = vpop.f32.mrb[0].mxu0
    %755 = vdwg.mxu0
    %v756 = vxor.u32 %v750, 2147483648
    %v757 = vxor.u32 %v753, 2147483648
    %v758 = vmul.f32 %v756, 1.442695
    %v759 = vpow.pop %v758
    %v760 = vmul.f32 %v757, 1.442695
    %v761 = vpow.pop %v760
    %v762 = vadd.f32 %v759, 1.0
    %v763 = vadd.f32 %v761, 1.0
    %v764 = vrcp.pop %v762
    %v765 = vmul.f32 1.0, %v764
    %v766 = vrcp.pop %v763
    %v767 = vmul.f32 1.0, %v766
    %v768 = vld [vmem:[%s7] sm:$0x1]
    %v769 = vpack.c.bf16 %v768, %v768
    %v770 = vpack.c.bf16 %v767, %v765
    %v771 = vld [vmem:[#allocation2] sm:$0x1]
    %773 = vset.pattern.permute.xlu0 0
    %774 = vperm.xlu0 %773, %v771
    %v775 = vpop.permute.xlu0 %774
    %v777 = vlaneseq
    %v778 = vshrl.u32 %v777, 7
    %v779 = vsub.s32 0, %v778
    %v780 = vrot.slane %v775, %v779
    %v782 = vsel %vm227, %v769, 0
    %v785 = vsel %vm267, %v770, 0
    %787 = vmatprep.subr.bf16.mxu0 0
    %788 = vmatpush1.bf16.msra.mxu0 %v785
    %789 = vmatprep.subr.bf16.mxu0 0
    %790 = vmatpush1.bf16.msra.mxu0 0
    %791 = vmatprep.subr.bf16.mxu0 0
    %792 = vmatpush1.bf16.msra.mxu0 0
    %793 = vmatprep.subr.bf16.mxu0 0
    %794 = vmatpush1.bf16.msra.mxu0 0
    %795 = vmatprep.subr.bf16.mxu0 0
    %796 = vmatpush1.bf16.msra.mxu0 0
    %797 = vmatprep.subr.bf16.mxu0 0
    %798 = vmatpush1.bf16.msra.mxu0 0
    %799 = vmatprep.subr.bf16.mxu0 0
    %800 = vmatpush1.bf16.msra.mxu0 0
    %801 = vmatprep.subr.bf16.mxu0 0
    %802 = vmatpush1.bf16.msra.mxu0 0
    %803 = vmatprep.subr.bf16.mxu0 0
    %804 = vmatpush1.bf16.msra.mxu0 0
    %805 = vmatprep.subr.bf16.mxu0 0
    %806 = vmatpush1.bf16.msra.mxu0 0
    %807 = vmatprep.subr.bf16.mxu0 0
    %808 = vmatpush1.bf16.msra.mxu0 0
    %809 = vmatprep.subr.bf16.mxu0 0
    %810 = vmatpush1.bf16.msra.mxu0 0
    %811 = vmatprep.subr.bf16.mxu0 0
    %812 = vmatpush1.bf16.msra.mxu0 0
    %813 = vmatprep.subr.bf16.mxu0 0
    %814 = vmatpush1.bf16.msra.mxu0 0
    %815 = vmatprep.subr.bf16.mxu0 0
    %816 = vmatpush1.bf16.msra.mxu0 0
    %817 = vmatprep.subr.bf16.mxu0 0
    %818 = vmatpush1.bf16.msra.mxu0 0
    %819 = vmatprep.mubr.bf16.mxu0 0
    %820 = vmatmul.mubr.bf16.gmra.mrb[0].mxu0 %v782
    %v821 = vpop.f32.mrb[0].mxu0
    %v822 = vadd.f32 %v780, %v821
    %v823 = vpop.f32.mrb[0].mxu0
    %v824 = vpop.f32.mrb[0].mxu0
    %v825 = vpop.f32.mrb[0].mxu0
    %826 = vdwg.mxu0
    %827 = vst [vmem:[#allocation3] sm:$0x1] %v822
    // Predicated region
    $region38: #{tpu_custom_call.1} parent=1 // pred_check
      _
    $region39: #{tpu_custom_call.1} parent=1 // pred_check_branch
      %829 = sbr.rel (0) target = $region41
    $region40: #{tpu_custom_call.1} parent=1 // pred_region
      %s831 = ssub.s32 16, 16
      %832 = vsyncadd [#allocation4], %s831
      %s834 = sshll.u32 [#allocation3], 4
      %s835 = int_to_ptr.vmem [resolvable:$true] %s834
      %837 = dma.vmem_to_hbm [thread:$0]  %s835, 16, %s9, [#allocation4]
    $region41: #{tpu_custom_call.1} parent=1 // pred_fallthru
      _
    // Predicated region
    $region42: #{tpu_custom_call.1} parent=1 // pred_check
      _
    $region43: #{tpu_custom_call.1} parent=1 // pred_check_branch
      %839 = sbr.rel (0) target = $region45
    $region44: #{tpu_custom_call.1} parent=1 // pred_region
      %840 = dma.done [#allocation4], 16
    $region45: #{tpu_custom_call.1} parent=1 // pred_fallthru
      _
    %841 = vsyncpa [#allocation4], 1

</llo_original>
